<compile_context>
chip_gen: v5e
topology: v5e:2x2
jax: 0.10.0
libtpu: 0.0.40
codegen_flags: <defaults>
</compile_context>

<pallas_src>
import functools

import jax
import jax.numpy as jnp
from jax import lax
from jax.experimental import pallas as pl
from jax.experimental.pallas import tpu as pltpu


def _fold_rows(x, acc_rows, op):
    """Reduce a [tm, C] tile to [acc_rows, C] by combining whole sublane groups.

    The reduction runs over a leading (major) dim, so it lowers to elementwise
    (VPU) combines of vreg slabs -- no per-tile cross-sublane XLU reduction.
    """
    tm, c = x.shape
    if tm == acc_rows:
        return x
    return op(x.reshape(tm // acc_rows, acc_rows, c), axis=0)


def _contrastive_loss_kernel(s_ref, drow_ref, dcol_ref, out_ref, sum_sc, acc_sc,
                             *, margin, max_violation, n, tm, acc_rows):
    i = pl.program_id(0)
    last = pl.num_programs(0) - 1

    s = s_ref[...].astype(jnp.float32)        # [tm, n] row tile of scores
    d1 = drow_ref[...]                        # [tm, 1] diag for these rows
    d2 = dcol_ref[...]                        # [1, n]  diag for all columns

    cost_s = jnp.maximum(margin + s - d1, 0.0)    # caption-retrieval hinge
    cost_im = jnp.maximum(margin + s - d2, 0.0)   # image-retrieval hinge

    @pl.when(i == 0)
    def _init():
        sum_sc[0] = jnp.float32(0.0)
        acc_sc[...] = jnp.zeros_like(acc_sc)

    if max_violation:
        # Zero the true diagonal entries of this row tile before taking maxima.
        row = lax.broadcasted_iota(jnp.int32, s.shape, 0) + i * tm
        col = lax.broadcasted_iota(jnp.int32, s.shape, 1)
        eye = row == col
        cost_s = jnp.where(eye, 0.0, cost_s)
        cost_im = jnp.where(eye, 0.0, cost_im)

        # Hardest negative per row: rows of this tile are complete (full-width tile).
        sum_sc[0] += jnp.sum(jnp.max(cost_s, axis=1))
        # Running column-wise max, folded to sublane height (elementwise VPU max).
        acc_sc[...] = jnp.maximum(acc_sc[...], _fold_rows(cost_im, acc_rows, jnp.max))

        @pl.when(i == last)
        def _finalize_mv():
            col_max = jnp.max(acc_sc[...], axis=0)          # one XLU reduce total
            out_ref[0, 0] = sum_sc[0] + jnp.sum(col_max)
    else:
        # No diagonal mask needed: each diagonal entry contributes exactly
        # relu(margin) to each of cost_s / cost_im; subtract once at finalize.
        acc_sc[...] += _fold_rows(cost_s + cost_im, acc_rows, jnp.sum)

        @pl.when(i == last)
        def _finalize_sum():
            out_ref[0, 0] = jnp.sum(acc_sc[...]) - 2.0 * n * max(float(margin), 0.0)


def _pick_row_tile(n, itemsize, target_tile_bytes=8 << 20):
    """Largest multiple-of-8 divisor of n whose (tm, n) tile is <= target bytes."""
    if n % 8 != 0:
        # Awkward row count: fall back to a single full block (fine for modest N).
        # TODO(synk): pad rows to a multiple of 8 for very large N not divisible by 8.
        return n
    cap = target_tile_bytes // max(1, n * itemsize)
    cap = min(n, max(8, (cap // 8) * 8))
    best = 8
    for tm in range(8, cap + 1, 8):
        if n % tm == 0:
            best = tm
    return best


def contrastive_loss(scores, margin=0.0, max_violation=False, row_tile=None):
    """Pallas TPU implementation of ContrastiveLoss.forward(scores)."""
    n = scores.shape[0]
    assert scores.ndim == 2 and scores.shape == (n, n), "scores must be square [N, N]"
    margin = float(margin)
    max_violation = bool(max_violation)

    # Diagonal computed once in XLA; passed as lane/sublane-friendly side inputs.
    diag = jnp.diagonal(scores).astype(jnp.float32)
    diag_row = diag.reshape(n, 1)
    diag_col = diag.reshape(1, n)

    itemsize = jnp.dtype(scores.dtype).itemsize
    if row_tile is None:
        tm = _pick_row_tile(n, itemsize)
    else:
        tm = int(row_tile)
        assert tm == n or (tm % 8 == 0 and n % tm == 0), \
            "row_tile must divide N and be a multiple of 8 (or equal N)"
    acc_rows = 8 if tm % 8 == 0 else tm
    grid = (n // tm,)

    kernel = functools.partial(
        _contrastive_loss_kernel,
        margin=margin, max_violation=max_violation,
        n=n, tm=tm, acc_rows=acc_rows)

    out = pl.pallas_call(
        kernel,
        out_shape=jax.ShapeDtypeStruct((1, 1), jnp.float32),
        grid_spec=pltpu.PrefetchScalarGridSpec(
            num_scalar_prefetch=0,
            grid=grid,
            in_specs=[
                pl.BlockSpec((tm, n), lambda i: (i, 0)),    # row tile of scores
                pl.BlockSpec((tm, 1), lambda i: (i, 0)),    # diag for these rows
                pl.BlockSpec((1, n), lambda i: (0, 0)),     # diag for all columns
            ],
            out_specs=pl.BlockSpec(memory_space=pltpu.SMEM),
            scratch_shapes=[
                pltpu.SMEM((1,), jnp.float32),              # running row-direction sum
                pltpu.VMEM((acc_rows, n), jnp.float32),     # running col-max / sum acc
            ]),
        compiler_params=pltpu.CompilerParams(
            dimension_semantics=("arbitrary",),
            vmem_limit_bytes=48 * 1024 * 1024),
        cost_estimate=pl.CostEstimate(
            flops=6 * n * n,
            transcendentals=0,
            bytes_accessed=n * n * itemsize + 2 * n * 4 + 4),
    )(scores, diag_row, diag_col)
    return out[0, 0]


def _reference_loss(scores, margin=0.0, max_violation=False):
    """Pure-JAX reference mirroring the PyTorch module."""
    s = scores.astype(jnp.float32)
    n = s.shape[0]
    diag = jnp.diag(s)
    d1 = diag[:, None]
    d2 = diag[None, :]
    eye = jnp.eye(n, dtype=bool)
    cost_s = jnp.where(eye, 0.0, jnp.maximum(margin + s - d1, 0.0))
    cost_im = jnp.where(eye, 0.0, jnp.maximum(margin + s - d2, 0.0))
    if max_violation:
        cost_s = jnp.max(cost_s, axis=1)
        cost_im = jnp.max(cost_im, axis=0)
    return jnp.sum(cost_s) + jnp.sum(cost_im)


if __name__ == "__main__":
    k0, k1 = jax.random.split(jax.random.PRNGKey(0))

    # Small demo consistent with the module: a batch of 8 image/caption pairs.
    N = 8
    scores = jax.random.normal(k0, (N, N), dtype=jnp.float32)

    # Default config (margin=0, max_violation=False), as in the module's __init__.
    loss = contrastive_loss(scores, margin=0.0, max_violation=False)
    jax.block_until_ready(loss)
    ref = _reference_loss(scores, margin=0.0, max_violation=False)
    assert jnp.allclose(loss, ref, atol=1e-4, rtol=1e-5), (loss, ref)

    # Exercise the max_violation branch.
    loss_mv = contrastive_loss(scores, margin=0.2, max_violation=True)
    jax.block_until_ready(loss_mv)
    ref_mv = _reference_loss(scores, margin=0.2, max_violation=True)
    assert jnp.allclose(loss_mv, ref_mv, atol=1e-4, rtol=1e-5), (loss_mv, ref_mv)

    # Exercise the multi-step (tiled, accumulating) path with a forced small row tile.
    N2 = 256
    scores2 = jax.random.normal(k1, (N2, N2), dtype=jnp.float32)
    for m, mv in [(0.0, False), (0.2, False), (0.2, True)]:
        got = contrastive_loss(scores2, margin=m, max_violation=mv, row_tile=64)
        jax.block_until_ready(got)
        want = _reference_loss(scores2, margin=m, max_violation=mv)
        assert jnp.allclose(got, want, atol=1e-2, rtol=1e-3), (m, mv, got, want)

    print("KERNEL_OK")
</pallas_src>

<mosaic_0001>
module attributes {stable_mosaic.version = 11 : i64} {
  func.func @_contrastive_loss_kernel(%arg0: i32, %arg1: memref<8x8xf32, #tpu.memory_space<vmem>>, %arg2: memref<8x1xf32, #tpu.memory_space<vmem>>, %arg3: memref<1x8xf32, #tpu.memory_space<vmem>>, %arg4: memref<1x1xf32, #tpu.memory_space<smem>>, %arg5: memref<1xf32, #tpu.memory_space<smem>>, %arg6: memref<8x8xf32, #tpu.memory_space<vmem>>) attributes {dimension_semantics = [#tpu.dimension_semantics<arbitrary>], iteration_bounds = array<i64: 1>, scalar_prefetch = 0 : i64, scratch_operands = 2 : i64, tpu.core_type = #tpu.core_type<tc>, window_params = [{transform_indices = @transform_0, window_bounds = array<i64: 8, 8>}, {transform_indices = @transform_1, window_bounds = array<i64: 8, 1>}, {pipeline_mode = #tpu.pipeline_mode<synchronous>, transform_indices = @transform_2, window_bounds = array<i64: 1, 8>}, {transform_indices = @transform_3, window_bounds = array<i64: 1, 1>}]} {
    %c0 = arith.constant 0 : index
    %c0_0 = arith.constant 0 : index
    %0 = vector.load %arg1[%c0, %c0_0] : memref<8x8xf32, #tpu.memory_space<vmem>>, vector<8x8xf32>
    %c0_1 = arith.constant 0 : index
    %c0_2 = arith.constant 0 : index
    %1 = vector.load %arg2[%c0_1, %c0_2] : memref<8x1xf32, #tpu.memory_space<vmem>>, vector<8x1xf32>
    %c0_3 = arith.constant 0 : index
    %c0_4 = arith.constant 0 : index
    %2 = vector.load %arg3[%c0_3, %c0_4] : memref<1x8xf32, #tpu.memory_space<vmem>>, vector<1x8xf32>
    %cst = arith.constant 0.000000e+00 : f32
    %3 = vector.broadcast %cst : f32 to vector<8x8xf32>
    %4 = arith.addf %3, %0 : vector<8x8xf32>
    %5 = vector.broadcast %1 : vector<8x1xf32> to vector<8x8xf32>
    %6 = arith.subf %4, %5 : vector<8x8xf32>
    %cst_5 = arith.constant 0.000000e+00 : f32
    %7 = vector.broadcast %cst_5 : f32 to vector<8x8xf32>
    %8 = arith.maximumf %6, %7 : vector<8x8xf32>
    %cst_6 = arith.constant 0.000000e+00 : f32
    %9 = vector.broadcast %cst_6 : f32 to vector<8x8xf32>
    %10 = arith.addf %9, %0 : vector<8x8xf32>
    %11 = vector.broadcast %2 : vector<1x8xf32> to vector<8x8xf32>
    %12 = arith.subf %10, %11 : vector<8x8xf32>
    %cst_7 = arith.constant 0.000000e+00 : f32
    %13 = vector.broadcast %cst_7 : f32 to vector<8x8xf32>
    %14 = arith.maximumf %12, %13 : vector<8x8xf32>
    %c0_i32 = arith.constant 0 : i32
    %15 = arith.cmpi eq, %arg0, %c0_i32 : i32
    %16 = arith.extui %15 : i1 to i32
    %c0_i32_8 = arith.constant 0 : i32
    %17 = arith.cmpi ne, %16, %c0_i32_8 : i32
    scf.if %17 {
      %cst_15 = arith.constant 0.000000e+00 : f32
      %c0_16 = arith.constant 0 : index
      %25 = memref.load %arg5[%c0_16] : memref<1xf32, #tpu.memory_space<smem>>
      memref.store %cst_15, %arg5[%c0_16] : memref<1xf32, #tpu.memory_space<smem>>
      %cst_17 = arith.constant 0.000000e+00 : f32
      %26 = vector.broadcast %cst_17 : f32 to vector<8x8xf32>
      %c0_18 = arith.constant 0 : index
      %c0_19 = arith.constant 0 : index
      %27 = vector.load %arg6[%c0_18, %c0_19] : memref<8x8xf32, #tpu.memory_space<vmem>>, vector<8x8xf32>
      tpu.vector_store %arg6[%c0_18, %c0_19], %26 {strides = array<i32>} : memref<8x8xf32, #tpu.memory_space<vmem>>, vector<8x8xf32>,
    } else {
    }
    %c0_9 = arith.constant 0 : index
    %c0_10 = arith.constant 0 : index
    %18 = vector.load %arg6[%c0_9, %c0_10] : memref<8x8xf32, #tpu.memory_space<vmem>>, vector<8x8xf32>
    %19 = arith.addf %8, %14 : vector<8x8xf32>
    %20 = arith.addf %18, %19 : vector<8x8xf32>
    %c0_11 = arith.constant 0 : index
    %c0_12 = arith.constant 0 : index
    %21 = vector.load %arg6[%c0_11, %c0_12] : memref<8x8xf32, #tpu.memory_space<vmem>>, vector<8x8xf32>
    tpu.vector_store %arg6[%c0_11, %c0_12], %20 {strides = array<i32>} : memref<8x8xf32, #tpu.memory_space<vmem>>, vector<8x8xf32>,
    %c0_i32_13 = arith.constant 0 : i32
    %22 = arith.cmpi eq, %arg0, %c0_i32_13 : i32
    %23 = arith.extui %22 : i1 to i32
    %c0_i32_14 = arith.constant 0 : i32
    %24 = arith.cmpi ne, %23, %c0_i32_14 : i32
    scf.if %24 {
      %c0_15 = arith.constant 0 : index
      %c0_16 = arith.constant 0 : index
      %25 = vector.load %arg6[%c0_15, %c0_16] : memref<8x8xf32, #tpu.memory_space<vmem>>, vector<8x8xf32>
      %26 = vector.shape_cast %25 : vector<8x8xf32> to vector<1x8x8xf32>
      %cst_17 = arith.constant dense<0.000000e+00> : vector<1xf32>
      %27 = vector.multi_reduction <add>, %26, %cst_17 [1, 2] : vector<1x8x8xf32> to vector<1xf32>
      %28 = vector.shape_cast %27 : vector<1xf32> to vector<1x1x1xf32>
      %29 = vector.extract %28[0, 0, 0] : f32 from vector<1x1x1xf32>
      %cst_18 = arith.constant 0.000000e+00 : f32
      %30 = arith.subf %29, %cst_18 : f32
      %c0_19 = arith.constant 0 : index
      %c0_20 = arith.constant 0 : index
      %31 = memref.load %arg4[%c0_19, %c0_20] : memref<1x1xf32, #tpu.memory_space<smem>>
      memref.store %30, %arg4[%c0_19, %c0_20] : memref<1x1xf32, #tpu.memory_space<smem>>
    } else {
    }
    return
  }
  func.func @transform_0(%arg0: i32) -> (i32, i32) {
    %c0_i32 = arith.constant 0 : i32
    %c0_i32_0 = arith.constant 0 : i32
    return %arg0, %c0_i32 : i32, i32
  }
  func.func @transform_1(%arg0: i32) -> (i32, i32) {
    %c0_i32 = arith.constant 0 : i32
    %c0_i32_0 = arith.constant 0 : i32
    return %arg0, %c0_i32 : i32, i32
  }
  func.func @transform_2(%arg0: i32) -> (i32, i32) {
    %c0_i32 = arith.constant 0 : i32
    %c0_i32_0 = arith.constant 0 : i32
    %c0_i32_1 = arith.constant 0 : i32
    return %c0_i32, %c0_i32_0 : i32, i32
  }
  func.func @transform_3(%arg0: i32) -> (i32, i32) {
    %c0_i32 = arith.constant 0 : i32
    %c0_i32_0 = arith.constant 0 : i32
    %c0_i32_1 = arith.constant 0 : i32
    return %c0_i32, %c0_i32_0 : i32, i32
  }
}

</mosaic_0001>

<llo_original>
// kernel: tpu_custom_call.1
$region0: #{tpu_custom_call.1}
  #allocation0 [shape = 'u32[]', space=smem, size = 0x4, offset = 0x4, fixed_abs, tag = 'smem constant byte address 0x4 - core index']
  #allocation1 [shape = 'u32[72,128]{1,0:T(1,128)}', space=vmem, size = 0x9000, scoped, tag = 'internal scratch']
  #allocation2 [shape = 'f32[1]{0:T(128)}', space=smem, size = 0x200, scoped, tag = 'scratch operand']
  #allocation3 [shape = 'f32[8,8]{1,0:T(8,128)}', space=vmem, size = 0x1000, scoped, tag = 'scratch operand']
  %s0 = inlined_call_operand.vmem [shape: f32[8,8], index: 0, kind: input, shape index: {}]
  %s1 = inlined_call_operand.vmem [shape: f32[8,1], index: 1, kind: input, shape index: {}]
  %s2 = inlined_call_operand.vmem [shape: f32[1,8], index: 2, kind: input, shape index: {}]
  %s3 = inlined_call_operand.hbm [shape: f32[1,1], index: 3, kind: output, shape index: {}]
  %s4 = sld [smem:[#allocation0]]
  $region30: #{tpu_custom_call.1} parent=0
    _
  %s6 = ssub.s32 1, %s4
  %s7 = scalar_select 0, %s6, %s4
  $region1: #{tpu_custom_call.1} parent=0
    #allocation4 [shape = 'u8[512]{0}', space=smem, size = 0x200, scoped, tag = 'output window, operand 0, single buffered']
    #allocation5 [shape = 's32[1]{0}', space=sflag, size = 0x4, scoped, tag = 'scoped memory for tpu_custom_call.1']
    %8 = vsyncpa [#allocation5], 0
    // Predicated region
    $region2: #{tpu_custom_call.1} parent=1 // pred_check
      _
    $region3: #{tpu_custom_call.1} parent=1 // pred_check_branch
      %10 = sbr.rel (0) target = $region5
    $region4: #{tpu_custom_call.1} parent=1 // pred_region
      _
    $region5: #{tpu_custom_call.1} parent=1 // pred_fallthru
      _
    // Predicated region
    $region6: #{tpu_custom_call.1} parent=1 // pred_check
      _
    $region7: #{tpu_custom_call.1} parent=1 // pred_check_branch
      %12 = sbr.rel (0) target = $region9
    $region8: #{tpu_custom_call.1} parent=1 // pred_region
      _
    $region9: #{tpu_custom_call.1} parent=1 // pred_fallthru
      _
    // Predicated region
    $region10: #{tpu_custom_call.1} parent=1 // pred_check
      _
    $region11: #{tpu_custom_call.1} parent=1 // pred_check_branch
      %14 = sbr.rel (0) target = $region13
    $region12: #{tpu_custom_call.1} parent=1 // pred_region
      _
    $region13: #{tpu_custom_call.1} parent=1 // pred_fallthru
      _
    %v15 = vld [vmem:[%s0] sm:$0xff]
    %v16 = vld [vmem:[%s1] sm:$0xff]
    %v17 = vld [vmem:[%s2] sm:$0x1]
    %v18 = vadd.f32 %v15, 0.0
    %20 = vset.pattern.permute.xlu0 0
    %21 = vperm.xlu0 %20, %v16
    %v22 = vpop.permute.xlu0 %21
    %v24 = vsub.f32 %v18, %v22
    %v25 = vmax.f32 %v24, 0.0
    %v27 = vperm.slane %v17, 0
    %v29 = vsub.f32 %v18, %v27
    %v30 = vmax.f32 %v29, 0.0
    %p31 = scmp.eq.s32.totalorder 0, 0
    // Predicated region
    $region14: #{tpu_custom_call.1} parent=1 // pred_check
      %p32 = pneg %p31
    $region15: #{tpu_custom_call.1} parent=1 // pred_check_branch
      %34 = sbr.rel (%p32) target = $region17
    $region16: #{tpu_custom_call.1} parent=1 // pred_region
      %s35 = scalar_lea.smem [#allocation2], 0
      %36 = sst [smem:[%s35]] 0.0
      %vm37 = vcmask 64512
      %38 = vst.msk [vmem:[#allocation3] sm:$0xff] %vm37, 0.0
    $region17: #{tpu_custom_call.1} parent=1 // pred_fallthru
      _
    %v39 = vld [vmem:[#allocation3] sm:$0xff]
    %v40 = vadd.f32 %v25, %v30
    %v41 = vadd.f32 %v39, %v40
    %vm42 = vcmask 64512
    %43 = vst.msk [vmem:[#allocation3] sm:$0xff] %vm42, %v41
    // Predicated region
    $region18: #{tpu_custom_call.1} parent=1 // pred_check
      %p44 = pneg %p31
    $region19: #{tpu_custom_call.1} parent=1 // pred_check_branch
      %46 = sbr.rel (%p44) target = $region21
    $region20: #{tpu_custom_call.1} parent=1 // pred_region
      %v47 = vld [vmem:[#allocation3] sm:$0xff]
      %v48 = vsel %vm42, %v47, 0.0
      %49 = vadd.xlane.f32.xlu0 %v48
      %v50 = vpop.xlane.xlu0 %49
      %v51 = vrot.slane %v50, 4
      %v52 = vadd.f32 %v50, %v51
      %v53 = vrot.slane %v52, 2
      %v54 = vadd.f32 %v52, %v53
      %v55 = vrot.slane %v54, 1
      %v56 = vadd.f32 %v54, %v55
      %s57 = vtos %v56
      %s58 = scalar_lea.smem [#allocation4], 0
      %59 = sst [smem:[%s58]] %s57
    $region21: #{tpu_custom_call.1} parent=1 // pred_fallthru
      _
    // Predicated region
    $region22: #{tpu_custom_call.1} parent=1 // pred_check
      _
    $region23: #{tpu_custom_call.1} parent=1 // pred_check_branch
      %61 = sbr.rel (0) target = $region25
    $region24: #{tpu_custom_call.1} parent=1 // pred_region
      %63 = vsyncadd [#allocation5], 0
      %s65 = sshll.u32 %s3, 4
      %s66 = int_to_ptr.hbm [resolvable:$true] %s65
      %68 = dma.smem_to_hbm [#allocation4], 16, %s66, [#allocation5]
    $region25: #{tpu_custom_call.1} parent=1 // pred_fallthru
      _
    // Predicated region
    $region26: #{tpu_custom_call.1} parent=1 // pred_check
      _
    $region27: #{tpu_custom_call.1} parent=1 // pred_check_branch
      %70 = sbr.rel (0) target = $region29
    $region28: #{tpu_custom_call.1} parent=1 // pred_region
      %72 = dma.done [#allocation5], 16
    $region29: #{tpu_custom_call.1} parent=1 // pred_fallthru
      _
    %73 = sfence
    %74 = vsyncpa [#allocation5], 1

</llo_original>
